<compile_context>
chip_gen: v6e
topology: v6e:2x2x1
jax: 0.10.0
libtpu: 0.0.40
codegen_flags: <defaults>
</compile_context>

<pallas_src>
import functools
import jax
import jax.numpy as jnp
from jax.experimental import pallas as pl
from jax.experimental.pallas import tpu as pltpu

# ----------------------------- config ---------------------------------------
SEQ = 8          # S
BATCH = 2        # B
EMBED = 32       # E
NUM_HEADS = 4    # H
HEAD_DIM = EMBED // NUM_HEADS
FF_DIM = 64      # F
LN_EPS = 1e-5

N_ROWS = SEQ * BATCH                     # folded activation rows (row r = s*B + b)

# layout of the packed f32 "smalls" buffer (mask bias + all (1,*) vectors, one DMA)
VEC_BASE = N_ROWS                        # rows [0:N_ROWS) x cols [0:N_ROWS) = mask bias
ROW_BQ, ROW_BK, ROW_BV, ROW_BO = VEC_BASE + 0, VEC_BASE + 1, VEC_BASE + 2, VEC_BASE + 3
ROW_G1, ROW_BE1 = VEC_BASE + 4, VEC_BASE + 5
ROW_BFF1, ROW_BFF2 = VEC_BASE + 6, VEC_BASE + 7
ROW_G2, ROW_BE2 = VEC_BASE + 8, VEC_BASE + 9
SMALLS_ROWS = ((VEC_BASE + 10 + 7) // 8) * 8          # 32
SMALLS_COLS = max(N_ROWS, EMBED, FF_DIM)              # 64


# ----------------------------- kernel ---------------------------------------
def _layernorm(y, gamma, beta):
    mu = jnp.mean(y, axis=-1, keepdims=True)
    var = jnp.mean((y - mu) ** 2, axis=-1, keepdims=True)
    return (y - mu) * jax.lax.rsqrt(var + LN_EPS) * gamma + beta


def transformer_block_kernel(
    x_ref,        # (N, E)                    f32
    smalls_ref,   # (SMALLS_ROWS, SMALLS_COLS) f32  mask bias + bias/gamma/beta rows
    wsq_ref,      # (4E + F, E)               bf16 [Wq_t*scale; Wk_t; Wv_t; Wout_t; Wff2_t]
    wff1_ref,     # (E, F)                    bf16 pre-transposed
    o_ref,        # (N, E)                    f32
    *, num_heads, head_dim,
):
    f32, bf16 = jnp.float32, jnp.bfloat16

    x = x_ref[...]                                   # (N, E) f32
    N, E = x.shape
    F = wff1_ref.shape[-1]
    xb = x.astype(bf16)

    # ---- packed small constants (single DMA) ----
    mask_bias = smalls_ref[0:N, 0:N]                 # (N, N) additive: 0 / -1e30

    def vrow(r, w):                                  # (1, w) f32 bias/gamma/beta row
        return smalls_ref[r:r + 1, 0:w]

    bq, bk, bv = vrow(ROW_BQ, E), vrow(ROW_BK, E), vrow(ROW_BV, E)
    b_out = vrow(ROW_BO, E)
    g1, be1 = vrow(ROW_G1, E), vrow(ROW_BE1, E)
    b_ff1 = vrow(ROW_BFF1, F)
    b_ff2 = vrow(ROW_BFF2, E)
    g2, be2 = vrow(ROW_G2, E), vrow(ROW_BE2, E)

    # ---- packed bf16 weights (row slices at 16-row-aligned offsets: no shuffles) ----
    wq = wsq_ref[0:E, :]                             # pre-scaled by 1/sqrt(head_dim)
    wk = wsq_ref[E:2 * E, :]
    wv = wsq_ref[2 * E:3 * E, :]
    wout = wsq_ref[3 * E:4 * E, :]
    wff2 = wsq_ref[4 * E:, :]                        # (F, E)

    # ---- Q/K/V: three lane-aligned dots (bf16 MXU operands, f32 accumulation) ----
    q = jnp.dot(xb, wq, preferred_element_type=f32) + bq     # (N, E), scale folded in
    k = jnp.dot(xb, wk, preferred_element_type=f32) + bk
    v = jnp.dot(xb, wv, preferred_element_type=f32) + bv
    qb, kb, vb = q.astype(bf16), k.astype(bf16), v.astype(bf16)

    # ---- per-head attention over both batches at once (additive batch-mask bias) ----
    dn_qkT = (((1,), (1,)), ((), ()))                # a @ b.T (contract head_dim)
    heads = []
    for h in range(num_heads):
        lo = h * head_dim
        hi = lo + head_dim
        s = jax.lax.dot_general(qb[:, lo:hi], kb[:, lo:hi], dn_qkT,
                                preferred_element_type=f32)          # (N, N)
        s = s + mask_bias
        s = s - jnp.max(s, axis=-1, keepdims=True)
        p = jnp.exp(s)
        p = p * pl.reciprocal(jnp.sum(p, axis=-1, keepdims=True), approx=True)
        heads.append(jnp.dot(p.astype(bf16), vb[:, lo:hi],
                             preferred_element_type=f32))            # (N, hd)

    # single output projection on the lane-concatenated head outputs
    attn = jnp.concatenate(heads, axis=-1)                           # (N, E) f32
    attn = jnp.dot(attn.astype(bf16), wout, preferred_element_type=f32) + b_out

    # ---- residual + norm1 (f32) ----
    x1 = _layernorm(x + attn, g1, be1)

    # ---- feed-forward (bf16 MXU, f32 elementwise) + residual + norm2 ----
    h1 = jnp.dot(x1.astype(bf16), wff1_ref[...], preferred_element_type=f32)
    h1 = jnp.maximum(h1 + b_ff1, 0.0)                # ReLU
    h2 = jnp.dot(h1.astype(bf16), wff2, preferred_element_type=f32) + b_ff2
    x2 = _layernorm(x1 + h2, g2, be2)

    o_ref[...] = x2.astype(o_ref.dtype)


# ----------------------------- wrapper ---------------------------------------
def transformer_block(x_sbe, params):
    """x_sbe: (S, B, E) float32  ->  (S, B, E) float32."""
    S, B, E = x_sbe.shape
    F = FF_DIM
    N = S * B
    x2d = x_sbe.reshape(N, E)            # free, contiguous fold: row r = s*B + b

    scale = 1.0 / (HEAD_DIM ** 0.5)

    # pre-transpose / pre-scale / pre-cast weights once at trace time, pack into
    # one bf16 sublane-stacked slab (all row boundaries are multiples of 16)
    w_qkv = params["w_qkv"]                                  # (3E, E)
    wsq = jnp.concatenate(
        [
            (w_qkv[:E] * scale).T,                           # Wq^T * 1/sqrt(hd)
            w_qkv[E:2 * E].T,                                # Wk^T
            w_qkv[2 * E:].T,                                 # Wv^T
            params["w_out"].T,                               # Wout^T
            params["w_ff2"].T,                               # Wff2^T  (F, E)
        ],
        axis=0,
    ).astype(jnp.bfloat16)                                   # (4E + F, E) = (192, 32)
    wff1 = params["w_ff1"].T.astype(jnp.bfloat16)            # (E, F) = (32, 64)

    # packed f32 small-constants buffer: additive batch mask + all (1,*) vectors
    r = jnp.arange(N)
    same_batch = (r[:, None] % B) == (r[None, :] % B)
    mask_bias = jnp.where(same_batch, 0.0, -1e30).astype(jnp.float32)
    smalls = jnp.zeros((SMALLS_ROWS, SMALLS_COLS), jnp.float32)
    smalls = smalls.at[:N, :N].set(mask_bias)
    smalls = smalls.at[ROW_BQ, :E].set(params["b_qkv"][0, :E] * scale)
    smalls = smalls.at[ROW_BK, :E].set(params["b_qkv"][0, E:2 * E])
    smalls = smalls.at[ROW_BV, :E].set(params["b_qkv"][0, 2 * E:])
    smalls = smalls.at[ROW_BO, :E].set(params["b_out"][0])
    smalls = smalls.at[ROW_G1, :E].set(params["g1"][0])
    smalls = smalls.at[ROW_BE1, :E].set(params["be1"][0])
    smalls = smalls.at[ROW_BFF1, :F].set(params["b_ff1"][0])
    smalls = smalls.at[ROW_BFF2, :E].set(params["b_ff2"][0])
    smalls = smalls.at[ROW_G2, :E].set(params["g2"][0])
    smalls = smalls.at[ROW_BE2, :E].set(params["be2"][0])

    kernel = functools.partial(
        transformer_block_kernel, num_heads=NUM_HEADS, head_dim=HEAD_DIM,
    )

    out2d = pl.pallas_call(
        kernel,
        out_shape=jax.ShapeDtypeStruct((N, E), jnp.float32),
        grid_spec=pltpu.PrefetchScalarGridSpec(
            num_scalar_prefetch=0,
            grid=(1,),                               # single step: no per-step overhead
            in_specs=[
                pl.BlockSpec((N, E), lambda i: (0, 0)),
                pl.BlockSpec((SMALLS_ROWS, SMALLS_COLS), lambda i: (0, 0)),
                pl.BlockSpec((4 * E + F, E), lambda i: (0, 0)),
                pl.BlockSpec((E, F), lambda i: (0, 0)),
            ],
            out_specs=pl.BlockSpec((N, E), lambda i: (0, 0)),
        ),
        compiler_params=pltpu.CompilerParams(
            dimension_semantics=("arbitrary",)
        ),
    )(x2d, smalls, wsq, wff1)

    return out2d.reshape(S, B, E)                    # free reshape back


# ----------------------------- reference (pure JAX) ---------------------------
def _ref_one(x, p):  # x: (S, E)
    E = EMBED
    qkv = x @ p["w_qkv"].T + p["b_qkv"][0]
    q, k, v = qkv[:, :E], qkv[:, E:2 * E], qkv[:, 2 * E:]
    outs = []
    for h in range(NUM_HEADS):
        lo, hi = h * HEAD_DIM, (h + 1) * HEAD_DIM
        s = (q[:, lo:hi] / (HEAD_DIM ** 0.5)) @ k[:, lo:hi].T
        p_ = jax.nn.softmax(s, axis=-1)
        outs.append(p_ @ v[:, lo:hi])
    attn = jnp.concatenate(outs, axis=-1) @ p["w_out"].T + p["b_out"][0]

    def ln(y, g, b):
        mu = jnp.mean(y, -1, keepdims=True)
        var = jnp.mean((y - mu) ** 2, -1, keepdims=True)
        return (y - mu) / jnp.sqrt(var + LN_EPS) * g[0] + b[0]

    x1 = ln(x + attn, p["g1"], p["be1"])
    h1 = jnp.maximum(x1 @ p["w_ff1"].T + p["b_ff1"][0], 0.0)
    h2 = h1 @ p["w_ff2"].T + p["b_ff2"][0]
    return ln(x1 + h2, p["g2"], p["be2"])


def reference(x_sbe, params):
    x_bse = jnp.transpose(x_sbe, (1, 0, 2))
    out = jax.vmap(lambda xb: _ref_one(xb, params))(x_bse)
    return jnp.transpose(out, (1, 0, 2))


# ----------------------------- main -------------------------------------------
if __name__ == "__main__":
    key = jax.random.PRNGKey(0)
    ks = jax.random.split(key, 9)

    params = {
        "w_qkv": 0.05 * jax.random.normal(ks[0], (3 * EMBED, EMBED), jnp.float32),
        "b_qkv": 0.01 * jax.random.normal(ks[1], (1, 3 * EMBED), jnp.float32),
        "w_out": 0.05 * jax.random.normal(ks[2], (EMBED, EMBED), jnp.float32),
        "b_out": 0.01 * jax.random.normal(ks[3], (1, EMBED), jnp.float32),
        "g1": jnp.ones((1, EMBED), jnp.float32),
        "be1": jnp.zeros((1, EMBED), jnp.float32),
        "w_ff1": 0.05 * jax.random.normal(ks[4], (FF_DIM, EMBED), jnp.float32),
        "b_ff1": 0.01 * jax.random.normal(ks[5], (1, FF_DIM), jnp.float32),
        "w_ff2": 0.05 * jax.random.normal(ks[6], (EMBED, FF_DIM), jnp.float32),
        "b_ff2": 0.01 * jax.random.normal(ks[7], (1, EMBED), jnp.float32),
        "g2": jnp.ones((1, EMBED), jnp.float32),
        "be2": jnp.zeros((1, EMBED), jnp.float32),
    }

    # input in PyTorch MultiheadAttention default layout: (seq, batch, embed)
    x = jax.random.normal(ks[8], (SEQ, BATCH, EMBED), jnp.float32)

    out = transformer_block(x, params)
    out = jax.block_until_ready(out)

    ref = jax.block_until_ready(reference(x, params))
    assert out.shape == (SEQ, BATCH, EMBED), out.shape
    assert jnp.allclose(out, ref, atol=2e-2, rtol=2e-2), (
        float(jnp.max(jnp.abs(out - ref)))
    )

    print("KERNEL_OK")
</pallas_src>

<mosaic_0001>
module attributes {stable_mosaic.version = 11 : i64} {
  func.func @transformer_block_kernel(%arg0: i32, %arg1: memref<16x32xf32, #tpu.memory_space<vmem>>, %arg2: memref<32x64xf32, #tpu.memory_space<vmem>>, %arg3: memref<192x32xbf16, #tpu.memory_space<vmem>>, %arg4: memref<32x64xbf16, #tpu.memory_space<vmem>>, %arg5: memref<16x32xf32, #tpu.memory_space<vmem>>) attributes {dimension_semantics = [#tpu.dimension_semantics<arbitrary>], iteration_bounds = array<i64: 1>, scalar_prefetch = 0 : i64, scratch_operands = 0 : i64, tpu.core_type = #tpu.core_type<tc>, window_params = [{pipeline_mode = #tpu.pipeline_mode<synchronous>, transform_indices = @transform_0, window_bounds = array<i64: 16, 32>}, {pipeline_mode = #tpu.pipeline_mode<synchronous>, transform_indices = @transform_1, window_bounds = array<i64: 32, 64>}, {pipeline_mode = #tpu.pipeline_mode<synchronous>, transform_indices = @transform_2, window_bounds = array<i64: 192, 32>}, {pipeline_mode = #tpu.pipeline_mode<synchronous>, transform_indices = @transform_3, window_bounds = array<i64: 32, 64>}, {pipeline_mode = #tpu.pipeline_mode<synchronous>, transform_indices = @transform_4, window_bounds = array<i64: 16, 32>}]} {
    %c0 = arith.constant 0 : index
    %c0_0 = arith.constant 0 : index
    %0 = vector.load %arg1[%c0, %c0_0] : memref<16x32xf32, #tpu.memory_space<vmem>>, vector<16x32xf32>
    %1 = arith.truncf %0 : vector<16x32xf32> to vector<16x32xbf16>
    %c0_1 = arith.constant 0 : index
    %c0_2 = arith.constant 0 : index
    %2 = vector.load %arg2[%c0_1, %c0_2] : memref<32x64xf32, #tpu.memory_space<vmem>>, vector<16x16xf32>
    %c16 = arith.constant 16 : index
    %c0_3 = arith.constant 0 : index
    %3 = vector.load %arg2[%c16, %c0_3] : memref<32x64xf32, #tpu.memory_space<vmem>>, vector<1x32xf32>
    %c17 = arith.constant 17 : index
    %c0_4 = arith.constant 0 : index
    %4 = vector.load %arg2[%c17, %c0_4] : memref<32x64xf32, #tpu.memory_space<vmem>>, vector<1x32xf32>
    %c18 = arith.constant 18 : index
    %c0_5 = arith.constant 0 : index
    %5 = vector.load %arg2[%c18, %c0_5] : memref<32x64xf32, #tpu.memory_space<vmem>>, vector<1x32xf32>
    %c19 = arith.constant 19 : index
    %c0_6 = arith.constant 0 : index
    %6 = vector.load %arg2[%c19, %c0_6] : memref<32x64xf32, #tpu.memory_space<vmem>>, vector<1x32xf32>
    %c20 = arith.constant 20 : index
    %c0_7 = arith.constant 0 : index
    %7 = vector.load %arg2[%c20, %c0_7] : memref<32x64xf32, #tpu.memory_space<vmem>>, vector<1x32xf32>
    %c21 = arith.constant 21 : index
    %c0_8 = arith.constant 0 : index
    %8 = vector.load %arg2[%c21, %c0_8] : memref<32x64xf32, #tpu.memory_space<vmem>>, vector<1x32xf32>
    %c22 = arith.constant 22 : index
    %c0_9 = arith.constant 0 : index
    %9 = vector.load %arg2[%c22, %c0_9] : memref<32x64xf32, #tpu.memory_space<vmem>>, vector<1x64xf32>
    %c23 = arith.constant 23 : index
    %c0_10 = arith.constant 0 : index
    %10 = vector.load %arg2[%c23, %c0_10] : memref<32x64xf32, #tpu.memory_space<vmem>>, vector<1x32xf32>
    %c24 = arith.constant 24 : index
    %c0_11 = arith.constant 0 : index
    %11 = vector.load %arg2[%c24, %c0_11] : memref<32x64xf32, #tpu.memory_space<vmem>>, vector<1x32xf32>
    %c25 = arith.constant 25 : index
    %c0_12 = arith.constant 0 : index
    %12 = vector.load %arg2[%c25, %c0_12] : memref<32x64xf32, #tpu.memory_space<vmem>>, vector<1x32xf32>
    %c0_13 = arith.constant 0 : index
    %c0_14 = arith.constant 0 : index
    %13 = vector.load %arg3[%c0_13, %c0_14] : memref<192x32xbf16, #tpu.memory_space<vmem>>, vector<32x32xbf16>
    %c32 = arith.constant 32 : index
    %c0_15 = arith.constant 0 : index
    %14 = vector.load %arg3[%c32, %c0_15] : memref<192x32xbf16, #tpu.memory_space<vmem>>, vector<32x32xbf16>
    %c64 = arith.constant 64 : index
    %c0_16 = arith.constant 0 : index
    %15 = vector.load %arg3[%c64, %c0_16] : memref<192x32xbf16, #tpu.memory_space<vmem>>, vector<32x32xbf16>
    %c96 = arith.constant 96 : index
    %c0_17 = arith.constant 0 : index
    %16 = vector.load %arg3[%c96, %c0_17] : memref<192x32xbf16, #tpu.memory_space<vmem>>, vector<32x32xbf16>
    %c128 = arith.constant 128 : index
    %c0_18 = arith.constant 0 : index
    %17 = vector.load %arg3[%c128, %c0_18] : memref<192x32xbf16, #tpu.memory_space<vmem>>, vector<64x32xbf16>
    %cst = arith.constant dense<0.000000e+00> : vector<16x32xf32>
    %18 = tpu.matmul %1, %13, %cst {dimension_numbers = #tpu.dot_dimension_numbers<[1], [0], [0], [1], [0, 0, 1, 1], [], []>} : vector<16x32xbf16>, vector<32x32xbf16>, vector<16x32xf32> -> vector<16x32xf32>
    %19 = vector.broadcast %3 : vector<1x32xf32> to vector<16x32xf32>
    %20 = arith.addf %18, %19 : vector<16x32xf32>
    %cst_19 = arith.constant dense<0.000000e+00> : vector<16x32xf32>
    %21 = tpu.matmul %1, %14, %cst_19 {dimension_numbers = #tpu.dot_dimension_numbers<[1], [0], [0], [1], [0, 0, 1, 1], [], []>} : vector<16x32xbf16>, vector<32x32xbf16>, vector<16x32xf32> -> vector<16x32xf32>
    %22 = vector.broadcast %4 : vector<1x32xf32> to vector<16x32xf32>
    %23 = arith.addf %21, %22 : vector<16x32xf32>
    %cst_20 = arith.constant dense<0.000000e+00> : vector<16x32xf32>
    %24 = tpu.matmul %1, %15, %cst_20 {dimension_numbers = #tpu.dot_dimension_numbers<[1], [0], [0], [1], [0, 0, 1, 1], [], []>} : vector<16x32xbf16>, vector<32x32xbf16>, vector<16x32xf32> -> vector<16x32xf32>
    %25 = vector.broadcast %5 : vector<1x32xf32> to vector<16x32xf32>
    %26 = arith.addf %24, %25 : vector<16x32xf32>
    %27 = arith.truncf %20 : vector<16x32xf32> to vector<16x32xbf16>
    %28 = arith.truncf %23 : vector<16x32xf32> to vector<16x32xbf16>
    %29 = arith.truncf %26 : vector<16x32xf32> to vector<16x32xbf16>
    %30 = vector.extract_strided_slice %27 {offsets = [0, 0], sizes = [16, 8], strides = [1, 1]} : vector<16x32xbf16> to vector<16x8xbf16>
    %31 = vector.extract_strided_slice %28 {offsets = [0, 0], sizes = [16, 8], strides = [1, 1]} : vector<16x32xbf16> to vector<16x8xbf16>
    %cst_21 = arith.constant dense<0.000000e+00> : vector<16x16xf32>
    %32 = tpu.matmul %30, %31, %cst_21 {dimension_numbers = #tpu.dot_dimension_numbers<[1], [1], [0], [0], [0, 0, 1, 0], [], []>} : vector<16x8xbf16>, vector<16x8xbf16>, vector<16x16xf32> -> vector<16x16xf32>
    %33 = arith.addf %32, %2 : vector<16x16xf32>
    %cst_22 = arith.constant dense<0xFF800000> : vector<16xf32>
    %34 = vector.multi_reduction <maximumf>, %33, %cst_22 [1] : vector<16x16xf32> to vector<16xf32>
    %35 = vector.shape_cast %34 : vector<16xf32> to vector<16x1xf32>
    %36 = vector.broadcast %35 : vector<16x1xf32> to vector<16x16xf32>
    %37 = arith.subf %33, %36 : vector<16x16xf32>
    %38 = math.exp %37 : vector<16x16xf32>
    %cst_23 = arith.constant dense<0.000000e+00> : vector<16xf32>
    %39 = vector.multi_reduction <add>, %38, %cst_23 [1] : vector<16x16xf32> to vector<16xf32>
    %40 = vector.shape_cast %39 : vector<16xf32> to vector<16x1xf32>
    %41 = tpu.reciprocal %40 {approx = true} : vector<16x1xf32> -> vector<16x1xf32>
    %42 = vector.broadcast %41 : vector<16x1xf32> to vector<16x16xf32>
    %43 = arith.mulf %38, %42 : vector<16x16xf32>
    %44 = arith.truncf %43 : vector<16x16xf32> to vector<16x16xbf16>
    %45 = vector.extract_strided_slice %29 {offsets = [0, 0], sizes = [16, 8], strides = [1, 1]} : vector<16x32xbf16> to vector<16x8xbf16>
    %cst_24 = arith.constant dense<0.000000e+00> : vector<16x8xf32>
    %46 = tpu.matmul %44, %45, %cst_24 {dimension_numbers = #tpu.dot_dimension_numbers<[1], [0], [0], [1], [0, 0, 1, 1], [], []>} : vector<16x16xbf16>, vector<16x8xbf16>, vector<16x8xf32> -> vector<16x8xf32>
    %47 = vector.extract_strided_slice %27 {offsets = [0, 8], sizes = [16, 8], strides = [1, 1]} : vector<16x32xbf16> to vector<16x8xbf16>
    %48 = vector.extract_strided_slice %28 {offsets = [0, 8], sizes = [16, 8], strides = [1, 1]} : vector<16x32xbf16> to vector<16x8xbf16>
    %cst_25 = arith.constant dense<0.000000e+00> : vector<16x16xf32>
    %49 = tpu.matmul %47, %48, %cst_25 {dimension_numbers = #tpu.dot_dimension_numbers<[1], [1], [0], [0], [0, 0, 1, 0], [], []>} : vector<16x8xbf16>, vector<16x8xbf16>, vector<16x16xf32> -> vector<16x16xf32>
    %50 = arith.addf %49, %2 : vector<16x16xf32>
    %cst_26 = arith.constant dense<0xFF800000> : vector<16xf32>
    %51 = vector.multi_reduction <maximumf>, %50, %cst_26 [1] : vector<16x16xf32> to vector<16xf32>
    %52 = vector.shape_cast %51 : vector<16xf32> to vector<16x1xf32>
    %53 = vector.broadcast %52 : vector<16x1xf32> to vector<16x16xf32>
    %54 = arith.subf %50, %53 : vector<16x16xf32>
    %55 = math.exp %54 : vector<16x16xf32>
    %cst_27 = arith.constant dense<0.000000e+00> : vector<16xf32>
    %56 = vector.multi_reduction <add>, %55, %cst_27 [1] : vector<16x16xf32> to vector<16xf32>
    %57 = vector.shape_cast %56 : vector<16xf32> to vector<16x1xf32>
    %58 = tpu.reciprocal %57 {approx = true} : vector<16x1xf32> -> vector<16x1xf32>
    %59 = vector.broadcast %58 : vector<16x1xf32> to vector<16x16xf32>
    %60 = arith.mulf %55, %59 : vector<16x16xf32>
    %61 = arith.truncf %60 : vector<16x16xf32> to vector<16x16xbf16>
    %62 = vector.extract_strided_slice %29 {offsets = [0, 8], sizes = [16, 8], strides = [1, 1]} : vector<16x32xbf16> to vector<16x8xbf16>
    %cst_28 = arith.constant dense<0.000000e+00> : vector<16x8xf32>
    %63 = tpu.matmul %61, %62, %cst_28 {dimension_numbers = #tpu.dot_dimension_numbers<[1], [0], [0], [1], [0, 0, 1, 1], [], []>} : vector<16x16xbf16>, vector<16x8xbf16>, vector<16x8xf32> -> vector<16x8xf32>
    %64 = vector.extract_strided_slice %27 {offsets = [0, 16], sizes = [16, 8], strides = [1, 1]} : vector<16x32xbf16> to vector<16x8xbf16>
    %65 = vector.extract_strided_slice %28 {offsets = [0, 16], sizes = [16, 8], strides = [1, 1]} : vector<16x32xbf16> to vector<16x8xbf16>
    %cst_29 = arith.constant dense<0.000000e+00> : vector<16x16xf32>
    %66 = tpu.matmul %64, %65, %cst_29 {dimension_numbers = #tpu.dot_dimension_numbers<[1], [1], [0], [0], [0, 0, 1, 0], [], []>} : vector<16x8xbf16>, vector<16x8xbf16>, vector<16x16xf32> -> vector<16x16xf32>
    %67 = arith.addf %66, %2 : vector<16x16xf32>
    %cst_30 = arith.constant dense<0xFF800000> : vector<16xf32>
    %68 = vector.multi_reduction <maximumf>, %67, %cst_30 [1] : vector<16x16xf32> to vector<16xf32>
    %69 = vector.shape_cast %68 : vector<16xf32> to vector<16x1xf32>
    %70 = vector.broadcast %69 : vector<16x1xf32> to vector<16x16xf32>
    %71 = arith.subf %67, %70 : vector<16x16xf32>
    %72 = math.exp %71 : vector<16x16xf32>
    %cst_31 = arith.constant dense<0.000000e+00> : vector<16xf32>
    %73 = vector.multi_reduction <add>, %72, %cst_31 [1] : vector<16x16xf32> to vector<16xf32>
    %74 = vector.shape_cast %73 : vector<16xf32> to vector<16x1xf32>
    %75 = tpu.reciprocal %74 {approx = true} : vector<16x1xf32> -> vector<16x1xf32>
    %76 = vector.broadcast %75 : vector<16x1xf32> to vector<16x16xf32>
    %77 = arith.mulf %72, %76 : vector<16x16xf32>
    %78 = arith.truncf %77 : vector<16x16xf32> to vector<16x16xbf16>
    %79 = vector.extract_strided_slice %29 {offsets = [0, 16], sizes = [16, 8], strides = [1, 1]} : vector<16x32xbf16> to vector<16x8xbf16>
    %cst_32 = arith.constant dense<0.000000e+00> : vector<16x8xf32>
    %80 = tpu.matmul %78, %79, %cst_32 {dimension_numbers = #tpu.dot_dimension_numbers<[1], [0], [0], [1], [0, 0, 1, 1], [], []>} : vector<16x16xbf16>, vector<16x8xbf16>, vector<16x8xf32> -> vector<16x8xf32>
    %81 = vector.extract_strided_slice %27 {offsets = [0, 24], sizes = [16, 8], strides = [1, 1]} : vector<16x32xbf16> to vector<16x8xbf16>
    %82 = vector.extract_strided_slice %28 {offsets = [0, 24], sizes = [16, 8], strides = [1, 1]} : vector<16x32xbf16> to vector<16x8xbf16>
    %cst_33 = arith.constant dense<0.000000e+00> : vector<16x16xf32>
    %83 = tpu.matmul %81, %82, %cst_33 {dimension_numbers = #tpu.dot_dimension_numbers<[1], [1], [0], [0], [0, 0, 1, 0], [], []>} : vector<16x8xbf16>, vector<16x8xbf16>, vector<16x16xf32> -> vector<16x16xf32>
    %84 = arith.addf %83, %2 : vector<16x16xf32>
    %cst_34 = arith.constant dense<0xFF800000> : vector<16xf32>
    %85 = vector.multi_reduction <maximumf>, %84, %cst_34 [1] : vector<16x16xf32> to vector<16xf32>
    %86 = vector.shape_cast %85 : vector<16xf32> to vector<16x1xf32>
    %87 = vector.broadcast %86 : vector<16x1xf32> to vector<16x16xf32>
    %88 = arith.subf %84, %87 : vector<16x16xf32>
    %89 = math.exp %88 : vector<16x16xf32>
    %cst_35 = arith.constant dense<0.000000e+00> : vector<16xf32>
    %90 = vector.multi_reduction <add>, %89, %cst_35 [1] : vector<16x16xf32> to vector<16xf32>
    %91 = vector.shape_cast %90 : vector<16xf32> to vector<16x1xf32>
    %92 = tpu.reciprocal %91 {approx = true} : vector<16x1xf32> -> vector<16x1xf32>
    %93 = vector.broadcast %92 : vector<16x1xf32> to vector<16x16xf32>
    %94 = arith.mulf %89, %93 : vector<16x16xf32>
    %95 = arith.truncf %94 : vector<16x16xf32> to vector<16x16xbf16>
    %96 = vector.extract_strided_slice %29 {offsets = [0, 24], sizes = [16, 8], strides = [1, 1]} : vector<16x32xbf16> to vector<16x8xbf16>
    %cst_36 = arith.constant dense<0.000000e+00> : vector<16x8xf32>
    %97 = tpu.matmul %95, %96, %cst_36 {dimension_numbers = #tpu.dot_dimension_numbers<[1], [0], [0], [1], [0, 0, 1, 1], [], []>} : vector<16x16xbf16>, vector<16x8xbf16>, vector<16x8xf32> -> vector<16x8xf32>
    %98 = tpu.concatenate %46, %63, %80, %97 in 1 : vector<16x8xf32>, vector<16x8xf32>, vector<16x8xf32>, vector<16x8xf32> -> vector<16x32xf32>
    %99 = arith.truncf %98 : vector<16x32xf32> to vector<16x32xbf16>
    %cst_37 = arith.constant dense<0.000000e+00> : vector<16x32xf32>
    %100 = tpu.matmul %99, %16, %cst_37 {dimension_numbers = #tpu.dot_dimension_numbers<[1], [0], [0], [1], [0, 0, 1, 1], [], []>} : vector<16x32xbf16>, vector<32x32xbf16>, vector<16x32xf32> -> vector<16x32xf32>
    %101 = vector.broadcast %6 : vector<1x32xf32> to vector<16x32xf32>
    %102 = arith.addf %100, %101 : vector<16x32xf32>
    %103 = arith.addf %0, %102 : vector<16x32xf32>
    %cst_38 = arith.constant dense<0.000000e+00> : vector<16xf32>
    %104 = vector.multi_reduction <add>, %103, %cst_38 [1] : vector<16x32xf32> to vector<16xf32>
    %105 = vector.shape_cast %104 : vector<16xf32> to vector<16x1xf32>
    %cst_39 = arith.constant 3.200000e+01 : f32
    %106 = vector.broadcast %cst_39 : f32 to vector<16x1xf32>
    %107 = arith.divf %105, %106 : vector<16x1xf32>
    %108 = vector.broadcast %107 : vector<16x1xf32> to vector<16x32xf32>
    %109 = arith.subf %103, %108 : vector<16x32xf32>
    %110 = arith.mulf %109, %109 : vector<16x32xf32>
    %cst_40 = arith.constant dense<0.000000e+00> : vector<16xf32>
    %111 = vector.multi_reduction <add>, %110, %cst_40 [1] : vector<16x32xf32> to vector<16xf32>
    %112 = vector.shape_cast %111 : vector<16xf32> to vector<16x1xf32>
    %cst_41 = arith.constant 3.200000e+01 : f32
    %113 = vector.broadcast %cst_41 : f32 to vector<16x1xf32>
    %114 = arith.divf %112, %113 : vector<16x1xf32>
    %115 = vector.broadcast %107 : vector<16x1xf32> to vector<16x32xf32>
    %116 = arith.subf %103, %115 : vector<16x32xf32>
    %cst_42 = arith.constant 9.99999974E-6 : f32
    %117 = vector.broadcast %cst_42 : f32 to vector<16x1xf32>
    %118 = arith.addf %114, %117 : vector<16x1xf32>
    %119 = math.rsqrt %118 : vector<16x1xf32>
    %120 = vector.broadcast %119 : vector<16x1xf32> to vector<16x32xf32>
    %121 = arith.mulf %116, %120 : vector<16x32xf32>
    %122 = vector.broadcast %7 : vector<1x32xf32> to vector<16x32xf32>
    %123 = arith.mulf %121, %122 : vector<16x32xf32>
    %124 = vector.broadcast %8 : vector<1x32xf32> to vector<16x32xf32>
    %125 = arith.addf %123, %124 : vector<16x32xf32>
    %126 = arith.truncf %125 : vector<16x32xf32> to vector<16x32xbf16>
    %c0_43 = arith.constant 0 : index
    %c0_44 = arith.constant 0 : index
    %127 = vector.load %arg4[%c0_43, %c0_44] : memref<32x64xbf16, #tpu.memory_space<vmem>>, vector<32x64xbf16>
    %cst_45 = arith.constant dense<0.000000e+00> : vector<16x64xf32>
    %128 = tpu.matmul %126, %127, %cst_45 {dimension_numbers = #tpu.dot_dimension_numbers<[1], [0], [0], [1], [0, 0, 1, 1], [], []>} : vector<16x32xbf16>, vector<32x64xbf16>, vector<16x64xf32> -> vector<16x64xf32>
    %129 = vector.broadcast %9 : vector<1x64xf32> to vector<16x64xf32>
    %130 = arith.addf %128, %129 : vector<16x64xf32>
    %cst_46 = arith.constant 0.000000e+00 : f32
    %131 = vector.broadcast %cst_46 : f32 to vector<16x64xf32>
    %132 = arith.maximumf %130, %131 : vector<16x64xf32>
    %133 = arith.truncf %132 : vector<16x64xf32> to vector<16x64xbf16>
    %cst_47 = arith.constant dense<0.000000e+00> : vector<16x32xf32>
    %134 = tpu.matmul %133, %17, %cst_47 {dimension_numbers = #tpu.dot_dimension_numbers<[1], [0], [0], [1], [0, 0, 1, 1], [], []>} : vector<16x64xbf16>, vector<64x32xbf16>, vector<16x32xf32> -> vector<16x32xf32>
    %135 = vector.broadcast %10 : vector<1x32xf32> to vector<16x32xf32>
    %136 = arith.addf %134, %135 : vector<16x32xf32>
    %137 = arith.addf %125, %136 : vector<16x32xf32>
    %cst_48 = arith.constant dense<0.000000e+00> : vector<16xf32>
    %138 = vector.multi_reduction <add>, %137, %cst_48 [1] : vector<16x32xf32> to vector<16xf32>
    %139 = vector.shape_cast %138 : vector<16xf32> to vector<16x1xf32>
    %cst_49 = arith.constant 3.200000e+01 : f32
    %140 = vector.broadcast %cst_49 : f32 to vector<16x1xf32>
    %141 = arith.divf %139, %140 : vector<16x1xf32>
    %142 = vector.broadcast %141 : vector<16x1xf32> to vector<16x32xf32>
    %143 = arith.subf %137, %142 : vector<16x32xf32>
    %144 = arith.mulf %143, %143 : vector<16x32xf32>
    %cst_50 = arith.constant dense<0.000000e+00> : vector<16xf32>
    %145 = vector.multi_reduction <add>, %144, %cst_50 [1] : vector<16x32xf32> to vector<16xf32>
    %146 = vector.shape_cast %145 : vector<16xf32> to vector<16x1xf32>
    %cst_51 = arith.constant 3.200000e+01 : f32
    %147 = vector.broadcast %cst_51 : f32 to vector<16x1xf32>
    %148 = arith.divf %146, %147 : vector<16x1xf32>
    %149 = vector.broadcast %141 : vector<16x1xf32> to vector<16x32xf32>
    %150 = arith.subf %137, %149 : vector<16x32xf32>
    %cst_52 = arith.constant 9.99999974E-6 : f32
    %151 = vector.broadcast %cst_52 : f32 to vector<16x1xf32>
    %152 = arith.addf %148, %151 : vector<16x1xf32>
    %153 = math.rsqrt %152 : vector<16x1xf32>
    %154 = vector.broadcast %153 : vector<16x1xf32> to vector<16x32xf32>
    %155 = arith.mulf %150, %154 : vector<16x32xf32>
    %156 = vector.broadcast %11 : vector<1x32xf32> to vector<16x32xf32>
    %157 = arith.mulf %155, %156 : vector<16x32xf32>
    %158 = vector.broadcast %12 : vector<1x32xf32> to vector<16x32xf32>
    %159 = arith.addf %157, %158 : vector<16x32xf32>
    %c0_53 = arith.constant 0 : index
    %c0_54 = arith.constant 0 : index
    %160 = vector.load %arg5[%c0_53, %c0_54] : memref<16x32xf32, #tpu.memory_space<vmem>>, vector<16x32xf32>
    tpu.vector_store %arg5[%c0_53, %c0_54], %159 {strides = array<i32>} : memref<16x32xf32, #tpu.memory_space<vmem>>, vector<16x32xf32>,
    return
  }
  func.func @transform_0(%arg0: i32) -> (i32, i32) {
    %c0_i32 = arith.constant 0 : i32
    %c0_i32_0 = arith.constant 0 : i32
    %c0_i32_1 = arith.constant 0 : i32
    return %c0_i32, %c0_i32_0 : i32, i32
  }
  func.func @transform_1(%arg0: i32) -> (i32, i32) {
    %c0_i32 = arith.constant 0 : i32
    %c0_i32_0 = arith.constant 0 : i32
    %c0_i32_1 = arith.constant 0 : i32
    return %c0_i32, %c0_i32_0 : i32, i32
  }
  func.func @transform_2(%arg0: i32) -> (i32, i32) {
    %c0_i32 = arith.constant 0 : i32
    %c0_i32_0 = arith.constant 0 : i32
    %c0_i32_1 = arith.constant 0 : i32
    return %c0_i32, %c0_i32_0 : i32, i32
  }
  func.func @transform_3(%arg0: i32) -> (i32, i32) {
    %c0_i32 = arith.constant 0 : i32
    %c0_i32_0 = arith.constant 0 : i32
    %c0_i32_1 = arith.constant 0 : i32
    return %c0_i32, %c0_i32_0 : i32, i32
  }
  func.func @transform_4(%arg0: i32) -> (i32, i32) {
    %c0_i32 = arith.constant 0 : i32
    %c0_i32_0 = arith.constant 0 : i32
    %c0_i32_1 = arith.constant 0 : i32
    return %c0_i32, %c0_i32_0 : i32, i32
  }
}

</mosaic_0001>

<llo_original>
// kernel: tpu_custom_call.1
$region0: #{tpu_custom_call.1}
  #allocation0 [shape = 'u32[]', space=smem, size = 0x4, offset = 0x4, fixed_abs, tag = 'smem constant byte address 0x4 - core index']
  #allocation1 [shape = 'u32[144,128]{1,0:T(1,128)}', space=vmem, size = 0x12000, scoped, tag = 'internal scratch']
  %s0 = inlined_call_operand.vmem [shape: f32[16,32], index: 0, kind: input, shape index: {}]
  %s1 = inlined_call_operand.vmem [shape: f32[32,64], index: 1, kind: input, shape index: {}]
  %s2 = inlined_call_operand.vmem [shape: bf16[192,32], index: 2, kind: input, shape index: {}]
  %s3 = inlined_call_operand.vmem [shape: bf16[32,64], index: 3, kind: input, shape index: {}]
  %s4 = inlined_call_operand.hbm [shape: f32[16,32], index: 4, kind: output, shape index: {}]
  %s5 = sld [smem:[#allocation0]]
  $region26: #{tpu_custom_call.1} parent=0
    _
  %s7 = ssub.s32 1, %s5
  %s8 = scalar_select 0, %s7, %s5
  $region1: #{tpu_custom_call.1} parent=0
    #allocation2 [shape = 'u8[8192]{0}', space=vmem, size = 0x2000, scoped, tag = 'output window, operand 0, single buffered']
    #allocation3 [shape = 's32[1]{0}', space=sflag, size = 0x4, scoped, tag = 'scoped memory for tpu_custom_call.1']
    %9 = vsyncpa [#allocation3], 0
    // Predicated region
    $region2: #{tpu_custom_call.1} parent=1 // pred_check
      _
    $region3: #{tpu_custom_call.1} parent=1 // pred_check_branch
      %11 = sbr.rel (0) target = $region5
    $region4: #{tpu_custom_call.1} parent=1 // pred_region
      _
    $region5: #{tpu_custom_call.1} parent=1 // pred_fallthru
      _
    // Predicated region
    $region6: #{tpu_custom_call.1} parent=1 // pred_check
      _
    $region7: #{tpu_custom_call.1} parent=1 // pred_check_branch
      %13 = sbr.rel (0) target = $region9
    $region8: #{tpu_custom_call.1} parent=1 // pred_region
      _
    $region9: #{tpu_custom_call.1} parent=1 // pred_fallthru
      _
    // Predicated region
    $region10: #{tpu_custom_call.1} parent=1 // pred_check
      _
    $region11: #{tpu_custom_call.1} parent=1 // pred_check_branch
      %15 = sbr.rel (0) target = $region13
    $region12: #{tpu_custom_call.1} parent=1 // pred_region
      _
    $region13: #{tpu_custom_call.1} parent=1 // pred_fallthru
      _
    // Predicated region
    $region14: #{tpu_custom_call.1} parent=1 // pred_check
      _
    $region15: #{tpu_custom_call.1} parent=1 // pred_check_branch
      %17 = sbr.rel (0) target = $region17
    $region16: #{tpu_custom_call.1} parent=1 // pred_region
      _
    $region17: #{tpu_custom_call.1} parent=1 // pred_fallthru
      _
    %v19 = vld [vmem:[%s0] sm:$0xff]
    %v20 = vld [vmem:[%s0 + $0x8] sm:$0xff]
    %v21 = vpack.c.bf16 %v20, %v19
    %v22 = vld [vmem:[%s1] sm:$0xff]
    %v23 = vld [vmem:[%s1 + $0x8] sm:$0xff]
    %v24 = vld [vmem:[%s1 + $0x10] sm:$0x1]
    %v25 = vld [vmem:[%s1 + $0x11] sm:$0x1]
    %v26 = vld [vmem:[%s1 + $0x12] sm:$0x1]
    %v27 = vld [vmem:[%s1 + $0x13] sm:$0x1]
    %v28 = vld [vmem:[%s1 + $0x14] sm:$0x1]
    %v29 = vld [vmem:[%s1 + $0x15] sm:$0x1]
    %v30 = vld [vmem:[%s1 + $0x16] sm:$0x1]
    %v31 = vld [vmem:[%s1 + $0x17] sm:$0x1]
    %v32 = vld [vmem:[%s1 + $0x18] sm:$0x1]
    %v33 = vld [vmem:[%s1 + $0x19] sm:$0x1]
    %v34 = vld [vmem:[%s2] sm:$0xf]
    %v35 = vld [vmem:[%s2 + $0x4] sm:$0xf]
    %v36 = vld [vmem:[%s2 + $0x8] sm:$0xf]
    %v37 = vld [vmem:[%s2 + $0xc] sm:$0xf]
    %v38 = vld [vmem:[%s2 + $0x10] sm:$0xf]
    %v39 = vld [vmem:[%s2 + $0x14] sm:$0xf]
    %v40 = vld [vmem:[%s2 + $0x18] sm:$0xf]
    %v41 = vld [vmem:[%s2 + $0x1c] sm:$0xf]
    %v42 = vld [vmem:[%s2 + $0x20] sm:$0xf]
    %v43 = vld [vmem:[%s2 + $0x24] sm:$0xf]
    %v44 = vld [vmem:[%s2 + $0x28] sm:$0xf]
    %v45 = vld [vmem:[%s2 + $0x2c] sm:$0xf]
    %v46 = vld [vmem:[%s2 + $0x30] sm:$0xf]
    %v47 = vld [vmem:[%s2 + $0x34] sm:$0xf]
    %v48 = vld [vmem:[%s2 + $0x38] sm:$0xf]
    %v49 = vld [vmem:[%s2 + $0x3c] sm:$0xf]
    %v50 = vld [vmem:[%s2 + $0x40] sm:$0xf]
    %v51 = vld [vmem:[%s2 + $0x44] sm:$0xf]
    %v52 = vld [vmem:[%s2 + $0x48] sm:$0xf]
    %v53 = vld [vmem:[%s2 + $0x4c] sm:$0xf]
    %v54 = vld [vmem:[%s2 + $0x50] sm:$0xf]
    %v55 = vld [vmem:[%s2 + $0x54] sm:$0xf]
    %v56 = vld [vmem:[%s2 + $0x58] sm:$0xf]
    %v57 = vld [vmem:[%s2 + $0x5c] sm:$0xf]
    %v58 = vlaneseq
    %v59 = vshrl.u32 %v58, 7
    %v60 = vsub.s32 0, %v59
    %v61 = vrot.slane %v24, %v60
    %v66 = vunpack.c.l.b16 %v34
    %v67 = vunpack.c.l.b16 %v35
    %v68 = vunpack.c.l.b16 %v36
    %v69 = vunpack.c.l.b16 %v37
    %v70 = vpack.c.b16 %v67, %v66
    %v71 = vpack.c.b16 %v69, %v68
    %vm74 = vcmask 261120
    %v76 = vsel %vm74, %v21, 0
    %78 = vmatprep.subr.bf16.mxu0 0
    %79 = vmatpush1.bf16.msra.mxu0 0
    %80 = vmatprep.subr.bf16.mxu0 0
    %81 = vmatpush1.bf16.msra.mxu0 0
    %82 = vmatprep.subr.bf16.mxu0 0
    %83 = vmatpush1.bf16.msra.mxu0 0
    %84 = vmatprep.subr.bf16.mxu0 0
    %85 = vmatpush1.bf16.msra.mxu0 0
    %86 = vmatprep.subr.bf16.mxu0 0
    %87 = vmatpush1.bf16.msra.mxu0 0
    %88 = vmatprep.subr.bf16.mxu0 0
    %89 = vmatpush1.bf16.msra.mxu0 0
    %90 = vmatprep.subr.bf16.mxu0 0
    %91 = vmatpush1.bf16.msra.mxu0 %v71
    %92 = vmatprep.subr.bf16.mxu0 0
    %93 = vmatpush1.bf16.msra.mxu0 %v70
    %94 = vmatprep.subr.bf16.mxu0 0
    %95 = vmatpush2.bf16.msra.mxu0 0
    %96 = vmatprep.subr.bf16.mxu0 0
    %97 = vmatpush2.bf16.msra.mxu0 0
    %98 = vmatprep.subr.bf16.mxu0 0
    %99 = vmatpush2.bf16.msra.mxu0 0
    %100 = vmatprep.subr.bf16.mxu0 0
    %101 = vmatpush2.bf16.msra.mxu0 0
    %102 = vmatprep.subr.bf16.mxu0 0
    %103 = vmatpush2.bf16.msra.mxu0 0
    %104 = vmatprep.subr.bf16.mxu0 0
    %105 = vmatpush2.bf16.msra.mxu0 0
    %106 = vmatprep.subr.bf16.mxu0 0
    %107 = vmatpush2.bf16.msra.mxu0 0
    %108 = vmatprep.subr.bf16.mxu0 0
    %109 = vmatpush2.bf16.msra.mxu0 0
    %110 = vmatprep.mubr.bf16.mxu0 0
    %111 = vmatmul.mubr.bf16.gmra.mxu0 %v76
    %v112 = vpop.f32.mrf.mxu0
    %v113 = vadd.f32 %v61, %v112
    %v114 = vpop.f32.mrf.mxu0
    %v115 = vpop.f32.mrf.mxu0
    %v116 = vadd.f32 %v61, %v115
    %v117 = vpop.f32.mrf.mxu0
    %118 = vdwg.mxu0
    %v119 = vlaneseq
    %v120 = vshrl.u32 %v119, 7
    %v121 = vsub.s32 0, %v120
    %v122 = vrot.slane %v25, %v121
    %v127 = vunpack.c.l.b16 %v38
    %v128 = vunpack.c.l.b16 %v39
    %v129 = vunpack.c.l.b16 %v40
    %v130 = vunpack.c.l.b16 %v41
    %v131 = vpack.c.b16 %v128, %v127
    %v132 = vpack.c.b16 %v130, %v129
    %135 = vmatprep.subr.bf16.mxu0 0
    %136 = vmatpush1.bf16.msra.mxu0 0
    %137 = vmatprep.subr.bf16.mxu0 0
    %138 = vmatpush1.bf16.msra.mxu0 0
    %139 = vmatprep.subr.bf16.mxu0 0
    %140 = vmatpush1.bf16.msra.mxu0 0
    %141 = vmatprep.subr.bf16.mxu0 0
    %142 = vmatpush1.bf16.msra.mxu0 0
    %143 = vmatprep.subr.bf16.mxu0 0
    %144 = vmatpush1.bf16.msra.mxu0 0
    %145 = vmatprep.subr.bf16.mxu0 0
    %146 = vmatpush1.bf16.msra.mxu0 0
    %147 = vmatprep.subr.bf16.mxu0 0
    %148 = vmatpush1.bf16.msra.mxu0 %v132
    %149 = vmatprep.subr.bf16.mxu0 0
    %150 = vmatpush1.bf16.msra.mxu0 %v131
    %151 = vmatprep.subr.bf16.mxu0 0
    %152 = vmatpush2.bf16.msra.mxu0 0
    %153 = vmatprep.subr.bf16.mxu0 0
    %154 = vmatpush2.bf16.msra.mxu0 0
    %155 = vmatprep.subr.bf16.mxu0 0
    %156 = vmatpush2.bf16.msra.mxu0 0
    %157 = vmatprep.subr.bf16.mxu0 0
    %158 = vmatpush2.bf16.msra.mxu0 0
    %159 = vmatprep.subr.bf16.mxu0 0
    %160 = vmatpush2.bf16.msra.mxu0 0
    %161 = vmatprep.subr.bf16.mxu0 0
    %162 = vmatpush2.bf16.msra.mxu0 0
    %163 = vmatprep.subr.bf16.mxu0 0
    %164 = vmatpush2.bf16.msra.mxu0 0
    %165 = vmatprep.subr.bf16.mxu0 0
    %166 = vmatpush2.bf16.msra.mxu0 0
    %167 = vmatprep.mubr.bf16.mxu0 0
    %168 = vmatmul.mubr.bf16.gmra.mxu0 %v76
    %v169 = vpop.f32.mrf.mxu0
    %v170 = vadd.f32 %v122, %v169
    %v171 = vpop.f32.mrf.mxu0
    %v172 = vpop.f32.mrf.mxu0
    %v173 = vadd.f32 %v122, %v172
    %v174 = vpop.f32.mrf.mxu0
    %175 = vdwg.mxu0
    %v176 = vlaneseq
    %v177 = vshrl.u32 %v176, 7
    %v178 = vsub.s32 0, %v177
    %v179 = vrot.slane %v26, %v178
    %v184 = vunpack.c.l.b16 %v42
    %v185 = vunpack.c.l.b16 %v43
    %v186 = vunpack.c.l.b16 %v44
    %v187 = vunpack.c.l.b16 %v45
    %v188 = vpack.c.b16 %v185, %v184
    %v189 = vpack.c.b16 %v187, %v186
    %192 = vmatprep.subr.bf16.mxu0 0
    %193 = vmatpush1.bf16.msra.mxu0 0
    %194 = vmatprep.subr.bf16.mxu0 0
    %195 = vmatpush1.bf16.msra.mxu0 0
    %196 = vmatprep.subr.bf16.mxu0 0
    %197 = vmatpush1.bf16.msra.mxu0 0
    %198 = vmatprep.subr.bf16.mxu0 0
    %199 = vmatpush1.bf16.msra.mxu0 0
    %200 = vmatprep.subr.bf16.mxu0 0
    %201 = vmatpush1.bf16.msra.mxu0 0
    %202 = vmatprep.subr.bf16.mxu0 0
    %203 = vmatpush1.bf16.msra.mxu0 0
    %204 = vmatprep.subr.bf16.mxu0 0
    %205 = vmatpush1.bf16.msra.mxu0 %v189
    %206 = vmatprep.subr.bf16.mxu0 0
    %207 = vmatpush1.bf16.msra.mxu0 %v188
    %208 = vmatprep.subr.bf16.mxu0 0
    %209 = vmatpush2.bf16.msra.mxu0 0
    %210 = vmatprep.subr.bf16.mxu0 0
    %211 = vmatpush2.bf16.msra.mxu0 0
    %212 = vmatprep.subr.bf16.mxu0 0
    %213 = vmatpush2.bf16.msra.mxu0 0
    %214 = vmatprep.subr.bf16.mxu0 0
    %215 = vmatpush2.bf16.msra.mxu0 0
    %216 = vmatprep.subr.bf16.mxu0 0
    %217 = vmatpush2.bf16.msra.mxu0 0
    %218 = vmatprep.subr.bf16.mxu0 0
    %219 = vmatpush2.bf16.msra.mxu0 0
    %220 = vmatprep.subr.bf16.mxu0 0
    %221 = vmatpush2.bf16.msra.mxu0 0
    %222 = vmatprep.subr.bf16.mxu0 0
    %223 = vmatpush2.bf16.msra.mxu0 0
    %224 = vmatprep.mubr.bf16.mxu0 0
    %225 = vmatmul.mubr.bf16.gmra.mxu0 %v76
    %v226 = vpop.f32.mrf.mxu0
    %v227 = vadd.f32 %v179, %v226
    %v228 = vpop.f32.mrf.mxu0
    %v229 = vpop.f32.mrf.mxu0
    %v230 = vadd.f32 %v179, %v229
    %v231 = vpop.f32.mrf.mxu0
    %232 = vdwg.mxu0
    %v233 = vpack.c.bf16 %v116, %v113
    %v234 = vpack.c.bf16 %v173, %v170
    %v235 = vpack.c.bf16 %v230, %v227
    %vm236 = vcmask 64512
    %v238 = vsel %vm236, %v233, 0
    %v241 = vsel %vm236, %v234, 0
    %243 = vmatprep.subr.bf16.mxu0 0
    %244 = vmatpush1.bf16.xpose.msra.mxu0 0
    %245 = vmatprep.subr.bf16.mxu0 0
    %246 = vmatpush1.bf16.xpose.msra.mxu0 0
    %247 = vmatprep.subr.bf16.mxu0 0
    %248 = vmatpush1.bf16.xpose.msra.mxu0 0
    %249 = vmatprep.subr.bf16.mxu0 0
    %250 = vmatpush1.bf16.xpose.msra.mxu0 0
    %251 = vmatprep.subr.bf16.mxu0 0
    %252 = vmatpush1.bf16.xpose.msra.mxu0 0
    %253 = vmatprep.subr.bf16.mxu0 0
    %254 = vmatpush1.bf16.xpose.msra.mxu0 0
    %255 = vmatprep.subr.bf16.mxu0 0
    %256 = vmatpush1.bf16.xpose.msra.mxu0 0
    %257 = vmatprep.subr.bf16.mxu0 0
    %258 = vmatpush1.bf16.xpose.msra.mxu0 %v241
    %259 = vmatprep.subr.bf16.mxu0 0
    %260 = vmatpush2.bf16.xpose.msra.mxu0 0
    %261 = vmatprep.subr.bf16.mxu0 0
    %262 = vmatpush2.bf16.xpose.msra.mxu0 0
    %263 = vmatprep.subr.bf16.mxu0 0
    %264 = vmatpush2.bf16.xpose.msra.mxu0 0
    %265 = vmatprep.subr.bf16.mxu0 0
    %266 = vmatpush2.bf16.xpose.msra.mxu0 0
    %267 = vmatprep.subr.bf16.mxu0 0
    %268 = vmatpush2.bf16.xpose.msra.mxu0 0
    %269 = vmatprep.subr.bf16.mxu0 0
    %270 = vmatpush2.bf16.xpose.msra.mxu0 0
    %271 = vmatprep.subr.bf16.mxu0 0
    %272 = vmatpush2.bf16.xpose.msra.mxu0 0
    %273 = vmatprep.subr.bf16.mxu0 0
    %274 = vmatpush2.bf16.xpose.msra.mxu0 0
    %275 = vmatprep.mubr.bf16.mxu0 0
    %276 = vmatmul.mubr.bf16.gmra.mxu0 %v238
    %v277 = vpop.f32.mrf.mxu0
    %v278 = vadd.f32 %v22, %v277
    %v279 = vpop.f32.mrf.mxu0
    %v280 = vpop.f32.mrf.mxu0
    %v281 = vadd.f32 %v23, %v280
    %v282 = vpop.f32.mrf.mxu0
    %283 = vdwg.mxu0
    %vm284 = vcmask 130048
    %v285 = vsel %vm284, %v278, -inf
    %286 = vmax.xlane.f32.xlu0 %v285
    %v287 = vpop.xlane.xlu0 %286
    %v288 = vsel %vm284, %v281, -inf
    %289 = vmax.xlane.f32.xlu0 %v288
    %v290 = vpop.xlane.xlu0 %289
    %v291 = vsub.f32 %v278, %v287
    %v292 = vsub.f32 %v281, %v290
    %v293 = vmul.f32 %v291, 1.442695
    %v294 = vpow.pop %v293
    %v295 = vmul.f32 %v292, 1.442695
    %v296 = vpow.pop %v295
    %v297 = vsel %vm284, %v294, 0.0
    %298 = vadd.xlane.f32.xlu0 %v297
    %v299 = vpop.xlane.xlu0 %298
    %v300 = vsel %vm284, %v296, 0.0
    %301 = vadd.xlane.f32.xlu0 %v300
    %v302 = vpop.xlane.xlu0 %301
    %v303 = vrcp.pop %v299
    %v304 = vrcp.pop %v302
    %v305 = vmul.f32 %v294, %v303
    %v306 = vmul.f32 %v296, %v304
    %v307 = vpack.c.bf16 %v306, %v305
    %v309 = vsel %vm284, %v307, 0
    %311 = vmatprep.subr.bf16.mxu0 0
    %312 = vmatpush1.bf16.msra.mxu0 0
    %313 = vmatprep.subr.bf16.mxu0 0
    %314 = vmatpush1.bf16.msra.mxu0 0
    %315 = vmatprep.subr.bf16.mxu0 0
    %316 = vmatpush1.bf16.msra.mxu0 0
    %317 = vmatprep.subr.bf16.mxu0 0
    %318 = vmatpush1.bf16.msra.mxu0 0
    %319 = vmatprep.subr.bf16.mxu0 0
    %320 = vmatpush1.bf16.msra.mxu0 0
    %321 = vmatprep.subr.bf16.mxu0 0
    %322 = vmatpush1.bf16.msra.mxu0 0
    %323 = vmatprep.subr.bf16.mxu0 0
    %324 = vmatpush1.bf16.msra.mxu0 0
    %325 = vmatprep.subr.bf16.mxu0 0
    %326 = vmatpush1.bf16.msra.mxu0 %v235
    %327 = vmatprep.subr.bf16.mxu0 0
    %328 = vmatpush2.bf16.msra.mxu0 0
    %329 = vmatprep.subr.bf16.mxu0 0
    %330 = vmatpush2.bf16.msra.mxu0 0
    %331 = vmatprep.subr.bf16.mxu0 0
    %332 = vmatpush2.bf16.msra.mxu0 0
    %333 = vmatprep.subr.bf16.mxu0 0
    %334 = vmatpush2.bf16.msra.mxu0 0
    %335 = vmatprep.subr.bf16.mxu0 0
    %336 = vmatpush2.bf16.msra.mxu0 0
    %337 = vmatprep.subr.bf16.mxu0 0
    %338 = vmatpush2.bf16.msra.mxu0 0
    %339 = vmatprep.subr.bf16.mxu0 0
    %340 = vmatpush2.bf16.msra.mxu0 0
    %341 = vmatprep.subr.bf16.mxu0 0
    %342 = vmatpush2.bf16.msra.mxu0 0
    %343 = vmatprep.mubr.bf16.mxu0 0
    %344 = vmatmul.mubr.bf16.gmra.mxu0 %v309
    %v345 = vpop.f32.mrf.mxu0
    %v346 = vadd.f32 0.0, %v345
    %v347 = vpop.f32.mrf.mxu0
    %v348 = vpop.f32.mrf.mxu0
    %v349 = vadd.f32 0.0, %v348
    %v350 = vpop.f32.mrf.mxu0
    %351 = vdwg.mxu0
    %353 = vrot.lane.b32.xlu0 %v233, 120
    %v354 = vpop.permute.xlu0 %353
    %356 = vrot.lane.b32.xlu0 %v234, 120
    %v357 = vpop.permute.xlu0 %356
    %v359 = vsel %vm236, %v354, 0
    %v362 = vsel %vm236, %v357, 0
    %364 = vmatprep.subr.bf16.mxu0 0
    %365 = vmatpush1.bf16.xpose.msra.mxu0 0
    %366 = vmatprep.subr.bf16.mxu0 0
    %367 = vmatpush1.bf16.xpose.msra.mxu0 0
    %368 = vmatprep.subr.bf16.mxu0 0
    %369 = vmatpush1.bf16.xpose.msra.mxu0 0
    %370 = vmatprep.subr.bf16.mxu0 0
    %371 = vmatpush1.bf16.xpose.msra.mxu0 0
    %372 = vmatprep.subr.bf16.mxu0 0
    %373 = vmatpush1.bf16.xpose.msra.mxu0 0
    %374 = vmatprep.subr.bf16.mxu0 0
    %375 = vmatpush1.bf16.xpose.msra.mxu0 0
    %376 = vmatprep.subr.bf16.mxu0 0
    %377 = vmatpush1.bf16.xpose.msra.mxu0 0
    %378 = vmatprep.subr.bf16.mxu0 0
    %379 = vmatpush1.bf16.xpose.msra.mxu0 %v362
    %380 = vmatprep.subr.bf16.mxu0 0
    %381 = vmatpush2.bf16.xpose.msra.mxu0 0
    %382 = vmatprep.subr.bf16.mxu0 0
    %383 = vmatpush2.bf16.xpose.msra.mxu0 0
    %384 = vmatprep.subr.bf16.mxu0 0
    %385 = vmatpush2.bf16.xpose.msra.mxu0 0
    %386 = vmatprep.subr.bf16.mxu0 0
    %387 = vmatpush2.bf16.xpose.msra.mxu0 0
    %388 = vmatprep.subr.bf16.mxu0 0
    %389 = vmatpush2.bf16.xpose.msra.mxu0 0
    %390 = vmatprep.subr.bf16.mxu0 0
    %391 = vmatpush2.bf16.xpose.msra.mxu0 0
    %392 = vmatprep.subr.bf16.mxu0 0
    %393 = vmatpush2.bf16.xpose.msra.mxu0 0
    %394 = vmatprep.subr.bf16.mxu0 0
    %395 = vmatpush2.bf16.xpose.msra.mxu0 0
    %396 = vmatprep.mubr.bf16.mxu0 0
    %397 = vmatmul.mubr.bf16.gmra.mxu0 %v359
    %v398 = vpop.f32.mrf.mxu0
    %v399 = vadd.f32 %v22, %v398
    %v400 = vpop.f32.mrf.mxu0
    %v401 = vpop.f32.mrf.mxu0
    %v402 = vadd.f32 %v23, %v401
    %v403 = vpop.f32.mrf.mxu0
    %404 = vdwg.mxu0
    %v405 = vsel %vm284, %v399, -inf
    %406 = vmax.xlane.f32.xlu0 %v405
    %v407 = vpop.xlane.xlu0 %406
    %v408 = vsel %vm284, %v402, -inf
    %409 = vmax.xlane.f32.xlu0 %v408
    %v410 = vpop.xlane.xlu0 %409
    %v411 = vsub.f32 %v399, %v407
    %v412 = vsub.f32 %v402, %v410
    %v413 = vmul.f32 %v411, 1.442695
    %v414 = vpow.pop %v413
    %v415 = vmul.f32 %v412, 1.442695
    %v416 = vpow.pop %v415
    %v417 = vsel %vm284, %v414, 0.0
    %418 = vadd.xlane.f32.xlu0 %v417
    %v419 = vpop.xlane.xlu0 %418
    %v420 = vsel %vm284, %v416, 0.0
    %421 = vadd.xlane.f32.xlu0 %v420
    %v422 = vpop.xlane.xlu0 %421
    %v423 = vrcp.pop %v419
    %v424 = vrcp.pop %v422
    %v425 = vmul.f32 %v414, %v423
    %v426 = vmul.f32 %v416, %v424
    %v427 = vpack.c.bf16 %v426, %v425
    %429 = vrot.lane.b32.xlu0 %v235, 120
    %v430 = vpop.permute.xlu0 %429
    %v433 = vsel %vm284, %v427, 0
    %435 = vmatprep.subr.bf16.mxu0 0
    %436 = vmatpush1.bf16.msra.mxu0 0
    %437 = vmatprep.subr.bf16.mxu0 0
    %438 = vmatpush1.bf16.msra.mxu0 0
    %439 = vmatprep.subr.bf16.mxu0 0
    %440 = vmatpush1.bf16.msra.mxu0 0
    %441 = vmatprep.subr.bf16.mxu0 0
    %442 = vmatpush1.bf16.msra.mxu0 0
    %443 = vmatprep.subr.bf16.mxu0 0
    %444 = vmatpush1.bf16.msra.mxu0 0
    %445 = vmatprep.subr.bf16.mxu0 0
    %446 = vmatpush1.bf16.msra.mxu0 0
    %447 = vmatprep.subr.bf16.mxu0 0
    %448 = vmatpush1.bf16.msra.mxu0 0
    %449 = vmatprep.subr.bf16.mxu0 0
    %450 = vmatpush1.bf16.msra.mxu0 %v430
    %451 = vmatprep.subr.bf16.mxu0 0
    %452 = vmatpush2.bf16.msra.mxu0 0
    %453 = vmatprep.subr.bf16.mxu0 0
    %454 = vmatpush2.bf16.msra.mxu0 0
    %455 = vmatprep.subr.bf16.mxu0 0
    %456 = vmatpush2.bf16.msra.mxu0 0
    %457 = vmatprep.subr.bf16.mxu0 0
    %458 = vmatpush2.bf16.msra.mxu0 0
    %459 = vmatprep.subr.bf16.mxu0 0
    %460 = vmatpush2.bf16.msra.mxu0 0
    %461 = vmatprep.subr.bf16.mxu0 0
    %462 = vmatpush2.bf16.msra.mxu0 0
    %463 = vmatprep.subr.bf16.mxu0 0
    %464 = vmatpush2.bf16.msra.mxu0 0
    %465 = vmatprep.subr.bf16.mxu0 0
    %466 = vmatpush2.bf16.msra.mxu0 0
    %467 = vmatprep.mubr.bf16.mxu0 0
    %468 = vmatmul.mubr.bf16.gmra.mxu0 %v433
    %v469 = vpop.f32.mrf.mxu0
    %v470 = vadd.f32 0.0, %v469
    %v471 = vpop.f32.mrf.mxu0
    %v472 = vpop.f32.mrf.mxu0
    %v473 = vadd.f32 0.0, %v472
    %v474 = vpop.f32.mrf.mxu0
    %475 = vdwg.mxu0
    %476 = vrot.lane.b32.xlu0 %v233, 112
    %v477 = vpop.permute.xlu0 %476
    %478 = vrot.lane.b32.xlu0 %v234, 112
    %v479 = vpop.permute.xlu0 %478
    %v481 = vsel %vm236, %v477, 0
    %v484 = vsel %vm236, %v479, 0
    %486 = vmatprep.subr.bf16.mxu0 0
    %487 = vmatpush1.bf16.xpose.msra.mxu0 0
    %488 = vmatprep.subr.bf16.mxu0 0
    %489 = vmatpush1.bf16.xpose.msra.mxu0 0
    %490 = vmatprep.subr.bf16.mxu0 0
    %491 = vmatpush1.bf16.xpose.msra.mxu0 0
    %492 = vmatprep.subr.bf16.mxu0 0
    %493 = vmatpush1.bf16.xpose.msra.mxu0 0
    %494 = vmatprep.subr.bf16.mxu0 0
    %495 = vmatpush1.bf16.xpose.msra.mxu0 0
    %496 = vmatprep.subr.bf16.mxu0 0
    %497 = vmatpush1.bf16.xpose.msra.mxu0 0
    %498 = vmatprep.subr.bf16.mxu0 0
    %499 = vmatpush1.bf16.xpose.msra.mxu0 0
    %500 = vmatprep.subr.bf16.mxu0 0
    %501 = vmatpush1.bf16.xpose.msra.mxu0 %v484
    %502 = vmatprep.subr.bf16.mxu0 0
    %503 = vmatpush2.bf16.xpose.msra.mxu0 0
    %504 = vmatprep.subr.bf16.mxu0 0
    %505 = vmatpush2.bf16.xpose.msra.mxu0 0
    %506 = vmatprep.subr.bf16.mxu0 0
    %507 = vmatpush2.bf16.xpose.msra.mxu0 0
    %508 = vmatprep.subr.bf16.mxu0 0
    %509 = vmatpush2.bf16.xpose.msra.mxu0 0
    %510 = vmatprep.subr.bf16.mxu0 0
    %511 = vmatpush2.bf16.xpose.msra.mxu0 0
    %512 = vmatprep.subr.bf16.mxu0 0
    %513 = vmatpush2.bf16.xpose.msra.mxu0 0
    %514 = vmatprep.subr.bf16.mxu0 0
    %515 = vmatpush2.bf16.xpose.msra.mxu0 0
    %516 = vmatprep.subr.bf16.mxu0 0
    %517 = vmatpush2.bf16.xpose.msra.mxu0 0
    %518 = vmatprep.mubr.bf16.mxu0 0
    %519 = vmatmul.mubr.bf16.gmra.mxu0 %v481
    %v520 = vpop.f32.mrf.mxu0
    %v521 = vadd.f32 %v22, %v520
    %v522 = vpop.f32.mrf.mxu0
    %v523 = vpop.f32.mrf.mxu0
    %v524 = vadd.f32 %v23, %v523
    %v525 = vpop.f32.mrf.mxu0
    %526 = vdwg.mxu0
    %v527 = vsel %vm284, %v521, -inf
    %528 = vmax.xlane.f32.xlu0 %v527
    %v529 = vpop.xlane.xlu0 %528
    %v530 = vsel %vm284, %v524, -inf
    %531 = vmax.xlane.f32.xlu0 %v530
    %v532 = vpop.xlane.xlu0 %531
    %v533 = vsub.f32 %v521, %v529
    %v534 = vsub.f32 %v524, %v532
    %v535 = vmul.f32 %v533, 1.442695
    %v536 = vpow.pop %v535
    %v537 = vmul.f32 %v534, 1.442695
    %v538 = vpow.pop %v537
    %v539 = vsel %vm284, %v536, 0.0
    %540 = vadd.xlane.f32.xlu0 %v539
    %v541 = vpop.xlane.xlu0 %540
    %v542 = vsel %vm284, %v538, 0.0
    %543 = vadd.xlane.f32.xlu0 %v542
    %v544 = vpop.xlane.xlu0 %543
    %v545 = vrcp.pop %v541
    %v546 = vrcp.pop %v544
    %v547 = vmul.f32 %v536, %v545
    %v548 = vmul.f32 %v538, %v546
    %v549 = vpack.c.bf16 %v548, %v547
    %550 = vrot.lane.b32.xlu0 %v235, 112
    %v551 = vpop.permute.xlu0 %550
    %v554 = vsel %vm284, %v549, 0
    %556 = vmatprep.subr.bf16.mxu0 0
    %557 = vmatpush1.bf16.msra.mxu0 0
    %558 = vmatprep.subr.bf16.mxu0 0
    %559 = vmatpush1.bf16.msra.mxu0 0
    %560 = vmatprep.subr.bf16.mxu0 0
    %561 = vmatpush1.bf16.msra.mxu0 0
    %562 = vmatprep.subr.bf16.mxu0 0
    %563 = vmatpush1.bf16.msra.mxu0 0
    %564 = vmatprep.subr.bf16.mxu0 0
    %565 = vmatpush1.bf16.msra.mxu0 0
    %566 = vmatprep.subr.bf16.mxu0 0
    %567 = vmatpush1.bf16.msra.mxu0 0
    %568 = vmatprep.subr.bf16.mxu0 0
    %569 = vmatpush1.bf16.msra.mxu0 0
    %570 = vmatprep.subr.bf16.mxu0 0
    %571 = vmatpush1.bf16.msra.mxu0 %v551
    %572 = vmatprep.subr.bf16.mxu0 0
    %573 = vmatpush2.bf16.msra.mxu0 0
    %574 = vmatprep.subr.bf16.mxu0 0
    %575 = vmatpush2.bf16.msra.mxu0 0
    %576 = vmatprep.subr.bf16.mxu0 0
    %577 = vmatpush2.bf16.msra.mxu0 0
    %578 = vmatprep.subr.bf16.mxu0 0
    %579 = vmatpush2.bf16.msra.mxu0 0
    %580 = vmatprep.subr.bf16.mxu0 0
    %581 = vmatpush2.bf16.msra.mxu0 0
    %582 = vmatprep.subr.bf16.mxu0 0
    %583 = vmatpush2.bf16.msra.mxu0 0
    %584 = vmatprep.subr.bf16.mxu0 0
    %585 = vmatpush2.bf16.msra.mxu0 0
    %586 = vmatprep.subr.bf16.mxu0 0
    %587 = vmatpush2.bf16.msra.mxu0 0
    %588 = vmatprep.mubr.bf16.mxu0 0
    %589 = vmatmul.mubr.bf16.gmra.mxu0 %v554
    %v590 = vpop.f32.mrf.mxu0
    %v591 = vadd.f32 0.0, %v590
    %v592 = vpop.f32.mrf.mxu0
    %v593 = vpop.f32.mrf.mxu0
    %v594 = vadd.f32 0.0, %v593
    %v595 = vpop.f32.mrf.mxu0
    %596 = vdwg.mxu0
    %597 = vrot.lane.b32.xlu0 %v233, 104
    %v598 = vpop.permute.xlu0 %597
    %599 = vrot.lane.b32.xlu0 %v234, 104
    %v600 = vpop.permute.xlu0 %599
    %v602 = vsel %vm236, %v598, 0
    %v605 = vsel %vm236, %v600, 0
    %607 = vmatprep.subr.bf16.mxu0 0
    %608 = vmatpush1.bf16.xpose.msra.mxu0 0
    %609 = vmatprep.subr.bf16.mxu0 0
    %610 = vmatpush1.bf16.xpose.msra.mxu0 0
    %611 = vmatprep.subr.bf16.mxu0 0
    %612 = vmatpush1.bf16.xpose.msra.mxu0 0
    %613 = vmatprep.subr.bf16.mxu0 0
    %614 = vmatpush1.bf16.xpose.msra.mxu0 0
    %615 = vmatprep.subr.bf16.mxu0 0
    %616 = vmatpush1.bf16.xpose.msra.mxu0 0
    %617 = vmatprep.subr.bf16.mxu0 0
    %618 = vmatpush1.bf16.xpose.msra.mxu0 0
    %619 = vmatprep.subr.bf16.mxu0 0
    %620 = vmatpush1.bf16.xpose.msra.mxu0 0
    %621 = vmatprep.subr.bf16.mxu0 0
    %622 = vmatpush1.bf16.xpose.msra.mxu0 %v605
    %623 = vmatprep.subr.bf16.mxu0 0
    %624 = vmatpush2.bf16.xpose.msra.mxu0 0
    %625 = vmatprep.subr.bf16.mxu0 0
    %626 = vmatpush2.bf16.xpose.msra.mxu0 0
    %627 = vmatprep.subr.bf16.mxu0 0
    %628 = vmatpush2.bf16.xpose.msra.mxu0 0
    %629 = vmatprep.subr.bf16.mxu0 0
    %630 = vmatpush2.bf16.xpose.msra.mxu0 0
    %631 = vmatprep.subr.bf16.mxu0 0
    %632 = vmatpush2.bf16.xpose.msra.mxu0 0
    %633 = vmatprep.subr.bf16.mxu0 0
    %634 = vmatpush2.bf16.xpose.msra.mxu0 0
    %635 = vmatprep.subr.bf16.mxu0 0
    %636 = vmatpush2.bf16.xpose.msra.mxu0 0
    %637 = vmatprep.subr.bf16.mxu0 0
    %638 = vmatpush2.bf16.xpose.msra.mxu0 0
    %639 = vmatprep.mubr.bf16.mxu0 0
    %640 = vmatmul.mubr.bf16.gmra.mxu0 %v602
    %v641 = vpop.f32.mrf.mxu0
    %v642 = vadd.f32 %v22, %v641
    %v643 = vpop.f32.mrf.mxu0
    %v644 = vpop.f32.mrf.mxu0
    %v645 = vadd.f32 %v23, %v644
    %v646 = vpop.f32.mrf.mxu0
    %647 = vdwg.mxu0
    %v648 = vsel %vm284, %v642, -inf
    %649 = vmax.xlane.f32.xlu0 %v648
    %v650 = vpop.xlane.xlu0 %649
    %v651 = vsel %vm284, %v645, -inf
    %652 = vmax.xlane.f32.xlu0 %v651
    %v653 = vpop.xlane.xlu0 %652
    %v654 = vsub.f32 %v642, %v650
    %v655 = vsub.f32 %v645, %v653
    %v656 = vmul.f32 %v654, 1.442695
    %v657 = vpow.pop %v656
    %v658 = vmul.f32 %v655, 1.442695
    %v659 = vpow.pop %v658
    %v660 = vsel %vm284, %v657, 0.0
    %661 = vadd.xlane.f32.xlu0 %v660
    %v662 = vpop.xlane.xlu0 %661
    %v663 = vsel %vm284, %v659, 0.0
    %664 = vadd.xlane.f32.xlu0 %v663
    %v665 = vpop.xlane.xlu0 %664
    %v666 = vrcp.pop %v662
    %v667 = vrcp.pop %v665
    %v668 = vmul.f32 %v657, %v666
    %v669 = vmul.f32 %v659, %v667
    %v670 = vpack.c.bf16 %v669, %v668
    %671 = vrot.lane.b32.xlu0 %v235, 104
    %v672 = vpop.permute.xlu0 %671
    %v675 = vsel %vm284, %v670, 0
    %677 = vmatprep.subr.bf16.mxu0 0
    %678 = vmatpush1.bf16.msra.mxu0 0
    %679 = vmatprep.subr.bf16.mxu0 0
    %680 = vmatpush1.bf16.msra.mxu0 0
    %681 = vmatprep.subr.bf16.mxu0 0
    %682 = vmatpush1.bf16.msra.mxu0 0
    %683 = vmatprep.subr.bf16.mxu0 0
    %684 = vmatpush1.bf16.msra.mxu0 0
    %685 = vmatprep.subr.bf16.mxu0 0
    %686 = vmatpush1.bf16.msra.mxu0 0
    %687 = vmatprep.subr.bf16.mxu0 0
    %688 = vmatpush1.bf16.msra.mxu0 0
    %689 = vmatprep.subr.bf16.mxu0 0
    %690 = vmatpush1.bf16.msra.mxu0 0
    %691 = vmatprep.subr.bf16.mxu0 0
    %692 = vmatpush1.bf16.msra.mxu0 %v672
    %693 = vmatprep.subr.bf16.mxu0 0
    %694 = vmatpush2.bf16.msra.mxu0 0
    %695 = vmatprep.subr.bf16.mxu0 0
    %696 = vmatpush2.bf16.msra.mxu0 0
    %697 = vmatprep.subr.bf16.mxu0 0
    %698 = vmatpush2.bf16.msra.mxu0 0
    %699 = vmatprep.subr.bf16.mxu0 0
    %700 = vmatpush2.bf16.msra.mxu0 0
    %701 = vmatprep.subr.bf16.mxu0 0
    %702 = vmatpush2.bf16.msra.mxu0 0
    %703 = vmatprep.subr.bf16.mxu0 0
    %704 = vmatpush2.bf16.msra.mxu0 0
    %705 = vmatprep.subr.bf16.mxu0 0
    %706 = vmatpush2.bf16.msra.mxu0 0
    %707 = vmatprep.subr.bf16.mxu0 0
    %708 = vmatpush2.bf16.msra.mxu0 0
    %709 = vmatprep.mubr.bf16.mxu0 0
    %710 = vmatmul.mubr.bf16.gmra.mxu0 %v675
    %v711 = vpop.f32.mrf.mxu0
    %v712 = vadd.f32 0.0, %v711
    %v713 = vpop.f32.mrf.mxu0
    %v714 = vpop.f32.mrf.mxu0
    %v715 = vadd.f32 0.0, %v714
    %v716 = vpop.f32.mrf.mxu0
    %717 = vdwg.mxu0
    %720 = vrot.lane.b32.xlu0 %v470, 8
    %v721 = vpop.permute.xlu0 %720
    %722 = vrot.lane.b32.xlu0 %v473, 8
    %v723 = vpop.permute.xlu0 %722
    %728 = vrot.lane.b32.xlu0 %v591, 16
    %v729 = vpop.permute.xlu0 %728
    %730 = vrot.lane.b32.xlu0 %v594, 16
    %v731 = vpop.permute.xlu0 %730
    %736 = vrot.lane.b32.xlu0 %v712, 24
    %v737 = vpop.permute.xlu0 %736
    %738 = vrot.lane.b32.xlu0 %v715, 24
    %v739 = vpop.permute.xlu0 %738
    %v742 = vsel %vm236, %v346, %v721
    %v743 = vsel %vm236, %v349, %v723
    %v744 = vsel %vm284, %v742, %v729
    %v745 = vsel %vm284, %v743, %v731
    %vm746 = vcmask 195584
    %v747 = vsel %vm746, %v744, %v737
    %v748 = vsel %vm746, %v745, %v739
    %v749 = vpack.c.bf16 %v748, %v747
    %v750 = vlaneseq
    %v751 = vshrl.u32 %v750, 7
    %v752 = vsub.s32 0, %v751
    %v753 = vrot.slane %v27, %v752
    %v758 = vunpack.c.l.b16 %v46
    %v759 = vunpack.c.l.b16 %v47
    %v760 = vunpack.c.l.b16 %v48
    %v761 = vunpack.c.l.b16 %v49
    %v762 = vpack.c.b16 %v759, %v758
    %v763 = vpack.c.b16 %v761, %v760
    %v767 = vsel %vm74, %v749, 0
    %769 = vmatprep.subr.bf16.mxu0 0
    %770 = vmatpush1.bf16.msra.mxu0 0
    %771 = vmatprep.subr.bf16.mxu0 0
    %772 = vmatpush1.bf16.msra.mxu0 0
    %773 = vmatprep.subr.bf16.mxu0 0
    %774 = vmatpush1.bf16.msra.mxu0 0
    %775 = vmatprep.subr.bf16.mxu0 0
    %776 = vmatpush1.bf16.msra.mxu0 0
    %777 = vmatprep.subr.bf16.mxu0 0
    %778 = vmatpush1.bf16.msra.mxu0 0
    %779 = vmatprep.subr.bf16.mxu0 0
    %780 = vmatpush1.bf16.msra.mxu0 0
    %781 = vmatprep.subr.bf16.mxu0 0
    %782 = vmatpush1.bf16.msra.mxu0 %v763
    %783 = vmatprep.subr.bf16.mxu0 0
    %784 = vmatpush1.bf16.msra.mxu0 %v762
    %785 = vmatprep.subr.bf16.mxu0 0
    %786 = vmatpush2.bf16.msra.mxu0 0
    %787 = vmatprep.subr.bf16.mxu0 0
    %788 = vmatpush2.bf16.msra.mxu0 0
    %789 = vmatprep.subr.bf16.mxu0 0
    %790 = vmatpush2.bf16.msra.mxu0 0
    %791 = vmatprep.subr.bf16.mxu0 0
    %792 = vmatpush2.bf16.msra.mxu0 0
    %793 = vmatprep.subr.bf16.mxu0 0
    %794 = vmatpush2.bf16.msra.mxu0 0
    %795 = vmatprep.subr.bf16.mxu0 0
    %796 = vmatpush2.bf16.msra.mxu0 0
    %797 = vmatprep.subr.bf16.mxu0 0
    %798 = vmatpush2.bf16.msra.mxu0 0
    %799 = vmatprep.subr.bf16.mxu0 0
    %800 = vmatpush2.bf16.msra.mxu0 0
    %801 = vmatprep.mubr.bf16.mxu0 0
    %802 = vmatmul.mubr.bf16.gmra.mxu0 %v767
    %v803 = vpop.f32.mrf.mxu0
    %v804 = vadd.f32 %v753, %v803
    %v805 = vpop.f32.mrf.mxu0
    %v806 = vpop.f32.mrf.mxu0
    %v807 = vadd.f32 %v753, %v806
    %v808 = vpop.f32.mrf.mxu0
    %809 = vdwg.mxu0
    %v810 = vadd.f32 %v19, %v804
    %v811 = vadd.f32 %v20, %v807
    %v812 = vsel %vm74, %v810, 0.0
    %813 = vadd.xlane.f32.xlu0 %v812
    %v814 = vpop.xlane.xlu0 %813
    %v815 = vsel %vm74, %v811, 0.0
    %816 = vadd.xlane.f32.xlu0 %v815
    %v817 = vpop.xlane.xlu0 %816
    %v818 = vrcp.pop 32.0
    %v819 = vmul.f32 %v814, %v818
    %v820 = vmul.f32 %v817, %v818
    %v821 = vsub.f32 %v810, %v819
    %v822 = vsub.f32 %v811, %v820
    %v823 = vmul.f32 %v821, %v821
    %v824 = vmul.f32 %v822, %v822
    %v825 = vsel %vm74, %v823, 0.0
    %826 = vadd.xlane.f32.xlu0 %v825
    %v827 = vpop.xlane.xlu0 %826
    %v828 = vsel %vm74, %v824, 0.0
    %829 = vadd.xlane.f32.xlu0 %v828
    %v830 = vpop.xlane.xlu0 %829
    %v831 = vmul.f32 %v827, %v818
    %v832 = vmul.f32 %v830, %v818
    %v833 = vadd.f32 %v831, 1e-05
    %v834 = vadd.f32 %v832, 1e-05
    %v835 = vrsqrt.pop %v833
    %v836 = vrsqrt.pop %v834
    %v837 = vmul.f32 %v821, %v835
    %v838 = vmul.f32 %v822, %v836
    %v839 = vlaneseq
    %v840 = vshrl.u32 %v839, 7
    %v841 = vsub.s32 0, %v840
    %v842 = vrot.slane %v28, %v841
    %v843 = vmul.f32 %v837, %v842
    %v844 = vmul.f32 %v838, %v842
    %v845 = vlaneseq
    %v846 = vshrl.u32 %v845, 7
    %v847 = vsub.s32 0, %v846
    %v848 = vrot.slane %v29, %v847
    %v849 = vadd.f32 %v843, %v848
    %v850 = vadd.f32 %v844, %v848
    %v851 = vpack.c.bf16 %v850, %v849
    %v852 = vld [vmem:[%s3] sm:$0xf]
    %v853 = vld [vmem:[%s3 + $0x4] sm:$0xf]
    %v854 = vld [vmem:[%s3 + $0x8] sm:$0xf]
    %v855 = vld [vmem:[%s3 + $0xc] sm:$0xf]
    %v856 = vlaneseq
    %v857 = vshrl.u32 %v856, 7
    %v858 = vsub.s32 0, %v857
    %v859 = vrot.slane %v30, %v858
    %v864 = vunpack.c.l.b16 %v852
    %v865 = vunpack.c.l.b16 %v853
    %v866 = vunpack.c.l.b16 %v854
    %v867 = vunpack.c.l.b16 %v855
    %v868 = vpack.c.b16 %v865, %v864
    %v869 = vpack.c.b16 %v867, %v866
    %v873 = vsel %vm74, %v851, 0
    %875 = vmatprep.subr.bf16.mxu0 0
    %876 = vmatpush1.bf16.msra.mxu0 0
    %877 = vmatprep.subr.bf16.mxu0 0
    %878 = vmatpush1.bf16.msra.mxu0 0
    %879 = vmatprep.subr.bf16.mxu0 0
    %880 = vmatpush1.bf16.msra.mxu0 0
    %881 = vmatprep.subr.bf16.mxu0 0
    %882 = vmatpush1.bf16.msra.mxu0 0
    %883 = vmatprep.subr.bf16.mxu0 0
    %884 = vmatpush1.bf16.msra.mxu0 0
    %885 = vmatprep.subr.bf16.mxu0 0
    %886 = vmatpush1.bf16.msra.mxu0 0
    %887 = vmatprep.subr.bf16.mxu0 0
    %888 = vmatpush1.bf16.msra.mxu0 %v869
    %889 = vmatprep.subr.bf16.mxu0 0
    %890 = vmatpush1.bf16.msra.mxu0 %v868
    %891 = vmatprep.subr.bf16.mxu0 0
    %892 = vmatpush2.bf16.msra.mxu0 0
    %893 = vmatprep.subr.bf16.mxu0 0
    %894 = vmatpush2.bf16.msra.mxu0 0
    %895 = vmatprep.subr.bf16.mxu0 0
    %896 = vmatpush2.bf16.msra.mxu0 0
    %897 = vmatprep.subr.bf16.mxu0 0
    %898 = vmatpush2.bf16.msra.mxu0 0
    %899 = vmatprep.subr.bf16.mxu0 0
    %900 = vmatpush2.bf16.msra.mxu0 0
    %901 = vmatprep.subr.bf16.mxu0 0
    %902 = vmatpush2.bf16.msra.mxu0 0
    %903 = vmatprep.subr.bf16.mxu0 0
    %904 = vmatpush2.bf16.msra.mxu0 0
    %905 = vmatprep.subr.bf16.mxu0 0
    %906 = vmatpush2.bf16.msra.mxu0 0
    %907 = vmatprep.mubr.bf16.mxu0 0
    %908 = vmatmul.mubr.bf16.gmra.mxu0 %v873
    %v909 = vpop.f32.mrf.mxu0
    %v910 = vadd.f32 %v859, %v909
    %v911 = vpop.f32.mrf.mxu0
    %v912 = vpop.f32.mrf.mxu0
    %v913 = vadd.f32 %v859, %v912
    %v914 = vpop.f32.mrf.mxu0
    %915 = vdwg.mxu0
    %v916 = vmax.f32 %v910, 0.0
    %v917 = vmax.f32 %v913, 0.0
    %v918 = vpack.c.bf16 %v917, %v916
    %v919 = vlaneseq
    %v920 = vshrl.u32 %v919, 7
    %v921 = vsub.s32 0, %v920
    %v922 = vrot.slane %v31, %v921
    %v931 = vunpack.c.l.b16 %v50
    %v932 = vunpack.c.l.b16 %v51
    %v933 = vunpack.c.l.b16 %v52
    %v934 = vunpack.c.l.b16 %v53
    %v935 = vunpack.c.l.b16 %v54
    %v936 = vunpack.c.l.b16 %v55
    %v937 = vunpack.c.l.b16 %v56
    %v938 = vunpack.c.l.b16 %v57
    %v939 = vpack.c.b16 %v932, %v931
    %v940 = vpack.c.b16 %v934, %v933
    %v941 = vpack.c.b16 %v936, %v935
    %v942 = vpack.c.b16 %v938, %v937
    %vm947 = vcmask 523264
    %v949 = vsel %vm947, %v918, 0
    %951 = vmatprep.subr.bf16.mxu0 0
    %952 = vmatpush1.bf16.msra.mxu0 0
    %953 = vmatprep.subr.bf16.mxu0 0
    %954 = vmatpush1.bf16.msra.mxu0 0
    %955 = vmatprep.subr.bf16.mxu0 0
    %956 = vmatpush1.bf16.msra.mxu0 0
    %957 = vmatprep.subr.bf16.mxu0 0
    %958 = vmatpush1.bf16.msra.mxu0 0
    %959 = vmatprep.subr.bf16.mxu0 0
    %960 = vmatpush1.bf16.msra.mxu0 %v942
    %961 = vmatprep.subr.bf16.mxu0 0
    %962 = vmatpush1.bf16.msra.mxu0 %v941
    %963 = vmatprep.subr.bf16.mxu0 0
    %964 = vmatpush1.bf16.msra.mxu0 %v940
    %965 = vmatprep.subr.bf16.mxu0 0
    %966 = vmatpush1.bf16.msra.mxu0 %v939
    %967 = vmatprep.subr.bf16.mxu0 0
    %968 = vmatpush2.bf16.msra.mxu0 0
    %969 = vmatprep.subr.bf16.mxu0 0
    %970 = vmatpush2.bf16.msra.mxu0 0
    %971 = vmatprep.subr.bf16.mxu0 0
    %972 = vmatpush2.bf16.msra.mxu0 0
    %973 = vmatprep.subr.bf16.mxu0 0
    %974 = vmatpush2.bf16.msra.mxu0 0
    %975 = vmatprep.subr.bf16.mxu0 0
    %976 = vmatpush2.bf16.msra.mxu0 0
    %977 = vmatprep.subr.bf16.mxu0 0
    %978 = vmatpush2.bf16.msra.mxu0 0
    %979 = vmatprep.subr.bf16.mxu0 0
    %980 = vmatpush2.bf16.msra.mxu0 0
    %981 = vmatprep.subr.bf16.mxu0 0
    %982 = vmatpush2.bf16.msra.mxu0 0
    %983 = vmatprep.mubr.bf16.mxu0 0
    %984 = vmatmul.mubr.bf16.gmra.mxu0 %v949
    %v985 = vpop.f32.mrf.mxu0
    %v986 = vadd.f32 %v922, %v985
    %v987 = vpop.f32.mrf.mxu0
    %v988 = vpop.f32.mrf.mxu0
    %v989 = vadd.f32 %v922, %v988
    %v990 = vpop.f32.mrf.mxu0
    %991 = vdwg.mxu0
    %v992 = vadd.f32 %v849, %v986
    %v993 = vadd.f32 %v850, %v989
    %v994 = vsel %vm74, %v992, 0.0
    %995 = vadd.xlane.f32.xlu0 %v994
    %v996 = vpop.xlane.xlu0 %995
    %v997 = vsel %vm74, %v993, 0.0
    %998 = vadd.xlane.f32.xlu0 %v997
    %v999 = vpop.xlane.xlu0 %998
    %v1000 = vmul.f32 %v996, %v818
    %v1001 = vmul.f32 %v999, %v818
    %v1002 = vsub.f32 %v992, %v1000
    %v1003 = vsub.f32 %v993, %v1001
    %v1004 = vmul.f32 %v1002, %v1002
    %v1005 = vmul.f32 %v1003, %v1003
    %v1006 = vsel %vm74, %v1004, 0.0
    %1007 = vadd.xlane.f32.xlu0 %v1006
    %v1008 = vpop.xlane.xlu0 %1007
    %v1009 = vsel %vm74, %v1005, 0.0
    %1010 = vadd.xlane.f32.xlu0 %v1009
    %v1011 = vpop.xlane.xlu0 %1010
    %v1012 = vmul.f32 %v1008, %v818
    %v1013 = vmul.f32 %v1011, %v818
    %v1014 = vadd.f32 %v1012, 1e-05
    %v1015 = vadd.f32 %v1013, 1e-05
    %v1016 = vrsqrt.pop %v1014
    %v1017 = vrsqrt.pop %v1015
    %v1018 = vmul.f32 %v1002, %v1016
    %v1019 = vmul.f32 %v1003, %v1017
    %v1020 = vlaneseq
    %v1021 = vshrl.u32 %v1020, 7
    %v1022 = vsub.s32 0, %v1021
    %v1023 = vrot.slane %v32, %v1022
    %v1024 = vmul.f32 %v1018, %v1023
    %v1025 = vmul.f32 %v1019, %v1023
    %v1026 = vlaneseq
    %v1027 = vshrl.u32 %v1026, 7
    %v1028 = vsub.s32 0, %v1027
    %v1029 = vrot.slane %v33, %v1028
    %v1030 = vadd.f32 %v1024, %v1029
    %v1031 = vadd.f32 %v1025, %v1029
    %1032 = vst.msk [vmem:[#allocation2] sm:$0xff] %vm74, %v1030
    %1033 = vst.msk [vmem:[#allocation2 + $0x8] sm:$0xff] %vm74, %v1031
    // Predicated region
    $region18: #{tpu_custom_call.1} parent=1 // pred_check
      _
    $region19: #{tpu_custom_call.1} parent=1 // pred_check_branch
      %1035 = sbr.rel (0) target = $region21
    $region20: #{tpu_custom_call.1} parent=1 // pred_region
      %s1037 = ssub.s32 256, 256
      %1038 = vsyncadd [#allocation3], %s1037
      %s1039 = sshll.u32 [#allocation2], 4
      %s1040 = int_to_ptr.vmem [resolvable:$true] %s1039
      %1045 = dma.vmem_to_hbm [thread:$0]  %s1040, 256, %s4, [#allocation3], 128, 128, 8
    $region21: #{tpu_custom_call.1} parent=1 // pred_fallthru
      _
    // Predicated region
    $region22: #{tpu_custom_call.1} parent=1 // pred_check
      _
    $region23: #{tpu_custom_call.1} parent=1 // pred_check_branch
      %1047 = sbr.rel (0) target = $region25
    $region24: #{tpu_custom_call.1} parent=1 // pred_region
      %1048 = dma.done [#allocation3], 256
    $region25: #{tpu_custom_call.1} parent=1 // pred_fallthru
      _
    %1049 = vsyncpa [#allocation3], 1

</llo_original>
